<compile_context>
chip_gen: v7x
topology: tpu7x:2x2x1
jax: 0.10.0
libtpu: 0.0.40
codegen_flags: <defaults>
</compile_context>

<pallas_src>
import functools

import jax
import jax.numpy as jnp
from jax.experimental import pallas as pl
from jax.experimental.pallas import tpu as pltpu


def _ce_partial_kernel(scores_ref, tags_ref, partial_ref, *, n_total, tile_n):
    """Per-tile partial sum of the cross-entropy NLL.

    scores_ref : (tile_n, C) input-dtype VMEM (bf16 or f32)
    tags_ref   : (tile_n, 1) i32 VMEM
    partial_ref: (1, 1, 128) f32 VMEM  -- tile's NLL sum broadcast across lanes
    """
    i = pl.program_id(0)

    # Single upcast in VMEM: HBM reads stay in the caller's (possibly bf16) dtype.
    s = scores_ref[...].astype(jnp.float32)             # (tile_n, C)
    t = tags_ref[...]                                    # (tile_n, 1) int32

    # Numerically-stable log-sum-exp along the class (lane) axis.
    m = jnp.max(s, axis=-1, keepdims=True)               # (tile_n, 1)
    lse = m + jnp.log(jnp.sum(jnp.exp(s - m), axis=-1, keepdims=True))

    # Target logit via a one-hot select (no dynamic lane gather on TPU).
    col = jax.lax.broadcasted_iota(jnp.int32, s.shape, 1)               # (tile_n, C)
    tgt = jnp.sum(jnp.where(col == t, s, jnp.zeros_like(s)),
                  axis=-1, keepdims=True)                                # (tile_n, 1)

    # Mask rows beyond n_total (ragged, UNPADDED boundary block).  This mask is
    # applied to nll after lse/tgt on purpose: jnp.where selects 0 even when the
    # other branch is NaN/Inf produced from unspecified boundary data.
    row = jax.lax.broadcasted_iota(jnp.int32, (tile_n, 1), 0) + i * tile_n
    nll = jnp.where(row < n_total, lse - tgt, jnp.zeros_like(lse))       # (tile_n, 1)

    tile_sum = jnp.sum(nll)
    # Lane-dense store of the (scalar) partial; the JAX side reads lane 0.
    partial_ref[...] = jnp.broadcast_to(tile_sum, (1, 1, 128)).astype(jnp.float32)


def _vmem_budget():
    """(per-score-buffer byte budget, vmem_limit ceiling) for this TPU generation."""
    try:
        cap = pltpu.get_tpu_info().vmem_capacity_bytes
    except Exception:  # unknown generation / query unavailable -> be conservative
        cap = None
    if cap is not None and cap >= (96 << 20):   # v5e / v6e: 128 MiB physical VMEM
        return 14 << 20, 64 << 20
    return 10 << 20, 48 << 20                    # v7x: 64 MiB per TC (or unknown)


def _choose_tile_n(n, c, score_itemsize, per_buf_budget):
    """Row tile: multiple of 8, sized from the per-buffer VMEM budget."""
    n8 = ((n + 7) // 8) * 8
    # A (tile_n, 1) int32 tag block is lane-padded to 128 lanes in VMEM: 512 B/row.
    per_row = c * score_itemsize + 128 * 4
    rows = max(8, per_buf_budget // per_row)
    if n > 8:
        # Guarantee >= 2 grid steps so the "parallel" axis shards across both
        # v7x TensorCores (negligible overhead on v5e/v6e).
        half = ((pl.cdiv(n, 2) + 7) // 8) * 8
        rows = min(rows, half)
    rows = min(rows, n8)
    return max(8, (rows // 8) * 8)


def probe_loss(batch, scores):
    """JAX/Pallas equivalent of ProbeLoss.forward(batch, scores)."""
    # torch.cat([torch.tensor(t) for t in batch['tags']]).long()
    tags = jnp.concatenate([jnp.asarray(t) for t in batch["tags"]]).astype(jnp.int32)

    scores = jnp.asarray(scores)                 # keep the caller's dtype (bf16 ok)
    n, c = scores.shape
    assert tags.shape[0] == n, "number of tags must match number of score rows"

    itemsize = jnp.dtype(scores.dtype).itemsize
    per_buf_budget, vmem_ceiling = _vmem_budget()
    tile_n = _choose_tile_n(n, c, itemsize, per_buf_budget)
    num_tiles = pl.cdiv(n, tile_n)

    tags2d = tags.reshape(n, 1)                  # no padding; boundary block is masked

    # Double-buffered scores + lane-padded tags + tiny outputs; single-counted.
    working = (2 * tile_n * c * itemsize          # scores tiles
               + 2 * tile_n * 128 * 4             # (tile_n,1) i32 tags, lane-padded
               + 2 * 8 * 128 * 4)                 # output blocks
    vmem_limit = int(min(vmem_ceiling, max(working + (4 << 20), 16 << 20)))

    kernel = functools.partial(_ce_partial_kernel, n_total=n, tile_n=tile_n)

    partials = pl.pallas_call(
        kernel,
        out_shape=jax.ShapeDtypeStruct((num_tiles, 1, 128), jnp.float32),
        grid=(num_tiles,),
        in_specs=[
            pl.BlockSpec((tile_n, c), lambda i: (i, 0)),     # scores row tile
            pl.BlockSpec((tile_n, 1), lambda i: (i, 0)),     # tags row tile
        ],
        out_specs=pl.BlockSpec((1, 1, 128), lambda i: (i, 0, 0)),
        compiler_params=pltpu.CompilerParams(
            dimension_semantics=("parallel",),               # tiles are independent
            vmem_limit_bytes=vmem_limit,
        ),
        cost_estimate=pl.CostEstimate(
            flops=6 * n * c,
            transcendentals=n * c + n,
            bytes_accessed=n * c * itemsize + 4 * n + 4 * num_tiles * 128,
        ),
    )(scores, tags2d)

    # Finish the mean with the GLOBAL N (not the tile size).
    loss = jnp.sum(partials[:, 0, 0]) / jnp.float32(n)
    return {"loss": loss, "tags": tags}


def _reference_loss(scores, tags):
    return jnp.mean(
        jax.nn.logsumexp(scores, axis=-1) - scores[jnp.arange(scores.shape[0]), tags]
    )


if __name__ == "__main__":
    key = jax.random.PRNGKey(0)
    k1, k2, k3, k4 = jax.random.split(key, 4)

    # --- small demo consistent with the module: 8 tokens, 128 tag classes, f32 ---
    N, C = 8, 128
    scores = jax.random.normal(k1, (N, C), dtype=jnp.float32)
    all_tags = jax.random.randint(k2, (N,), 0, C, dtype=jnp.int32)
    batch = {"tags": [all_tags[:3], all_tags[3:]]}   # per-sentence tag lists

    out = probe_loss(batch, scores)
    loss = jax.block_until_ready(out["loss"])
    ref = _reference_loss(scores, all_tags)
    assert jnp.allclose(loss, ref, atol=5e-4, rtol=5e-5), (loss, ref)
    assert jnp.array_equal(out["tags"], all_tags)

    # --- multi-tile bf16 path: exercises pipelining, the unpadded ragged
    #     boundary block, row masking, and the >=2-tile megacore split ---
    N2, C2 = 1999, 256
    scores2 = jax.random.normal(k3, (N2, C2), dtype=jnp.float32).astype(jnp.bfloat16)
    tags2 = jax.random.randint(k4, (N2,), 0, C2, dtype=jnp.int32)
    batch2 = {"tags": [tags2[:700], tags2[700:1500], tags2[1500:]]}

    out2 = probe_loss(batch2, scores2)
    loss2 = jax.block_until_ready(out2["loss"])
    ref2 = _reference_loss(scores2.astype(jnp.float32), tags2)
    assert jnp.allclose(loss2, ref2, atol=5e-4, rtol=5e-5), (loss2, ref2)
    assert jnp.array_equal(out2["tags"], tags2)

    print("KERNEL_OK")
</pallas_src>

<mosaic_0001>
module attributes {stable_mosaic.version = 11 : i64} {
  func.func @_ce_partial_kernel(%arg0: i32, %arg1: memref<8x128xf32, #tpu.memory_space<vmem>>, %arg2: memref<8x1xi32, #tpu.memory_space<vmem>>, %arg3: memref<1x1x128xf32, #tpu.memory_space<vmem>>) attributes {dimension_semantics = [#tpu.dimension_semantics<parallel>], iteration_bounds = array<i64: 1>, scalar_prefetch = 0 : i64, scratch_operands = 0 : i64, tpu.core_type = #tpu.core_type<tc>, window_params = [{transform_indices = @transform_0, window_bounds = array<i64: 8, 128>}, {transform_indices = @transform_1, window_bounds = array<i64: 8, 1>}, {transform_indices = @transform_2, window_bounds = array<i64: 1, 1, 128>}]} {
    %c0 = arith.constant 0 : index
    %c0_0 = arith.constant 0 : index
    %0 = vector.load %arg1[%c0, %c0_0] : memref<8x128xf32, #tpu.memory_space<vmem>>, vector<8x128xf32>
    %c0_1 = arith.constant 0 : index
    %c0_2 = arith.constant 0 : index
    %1 = vector.load %arg2[%c0_1, %c0_2] : memref<8x1xi32, #tpu.memory_space<vmem>>, vector<8x1xi32>
    %cst = arith.constant dense<0xFF800000> : vector<8xf32>
    %2 = vector.multi_reduction <maximumf>, %0, %cst [1] : vector<8x128xf32> to vector<8xf32>
    %3 = vector.shape_cast %2 : vector<8xf32> to vector<8x1xf32>
    %4 = vector.broadcast %3 : vector<8x1xf32> to vector<8x128xf32>
    %5 = arith.subf %0, %4 : vector<8x128xf32>
    %6 = math.exp %5 : vector<8x128xf32>
    %cst_3 = arith.constant dense<0.000000e+00> : vector<8xf32>
    %7 = vector.multi_reduction <add>, %6, %cst_3 [1] : vector<8x128xf32> to vector<8xf32>
    %8 = vector.shape_cast %7 : vector<8xf32> to vector<8x1xf32>
    %9 = math.log %8 : vector<8x1xf32>
    %10 = arith.addf %3, %9 : vector<8x1xf32>
    %11 = tpu.iota {dimensions = array<i32: 1>} : vector<8x128xi32>
    %12 = vector.broadcast %1 : vector<8x1xi32> to vector<8x128xi32>
    %13 = arith.cmpi eq, %11, %12 : vector<8x128xi32>
    %cst_4 = arith.constant 0.000000e+00 : f32
    %14 = vector.broadcast %cst_4 : f32 to vector<8x128xf32>
    %15 = arith.select %13, %0, %14 : vector<8x128xi1>, vector<8x128xf32>
    %cst_5 = arith.constant dense<0.000000e+00> : vector<8xf32>
    %16 = vector.multi_reduction <add>, %15, %cst_5 [1] : vector<8x128xf32> to vector<8xf32>
    %17 = vector.shape_cast %16 : vector<8xf32> to vector<8x1xf32>
    %18 = tpu.iota {dimensions = array<i32: 0>} : vector<8x1xi32>
    %c8_i32 = arith.constant 8 : i32
    %19 = arith.muli %arg0, %c8_i32 : i32
    %20 = vector.broadcast %19 : i32 to vector<8x1xi32>
    %21 = arith.addi %18, %20 : vector<8x1xi32>
    %c8_i32_6 = arith.constant 8 : i32
    %22 = vector.broadcast %c8_i32_6 : i32 to vector<8x1xi32>
    %23 = arith.cmpi slt, %21, %22 : vector<8x1xi32>
    %24 = arith.subf %10, %17 : vector<8x1xf32>
    %cst_7 = arith.constant 0.000000e+00 : f32
    %25 = vector.broadcast %cst_7 : f32 to vector<8x1xf32>
    %26 = arith.select %23, %24, %25 : vector<8x1xi1>, vector<8x1xf32>
    %27 = vector.shape_cast %26 : vector<8x1xf32> to vector<1x8x1xf32>
    %cst_8 = arith.constant dense<0.000000e+00> : vector<1xf32>
    %28 = vector.multi_reduction <add>, %27, %cst_8 [1, 2] : vector<1x8x1xf32> to vector<1xf32>
    %29 = vector.shape_cast %28 : vector<1xf32> to vector<1x1x1xf32>
    %30 = vector.extract %29[0, 0, 0] : f32 from vector<1x1x1xf32>
    %31 = vector.broadcast %30 : f32 to vector<1x1x128xf32>
    %c0_9 = arith.constant 0 : index
    %c0_10 = arith.constant 0 : index
    %c0_11 = arith.constant 0 : index
    %32 = vector.load %arg3[%c0_9, %c0_10, %c0_11] : memref<1x1x128xf32, #tpu.memory_space<vmem>>, vector<1x1x128xf32>
    tpu.vector_store %arg3[%c0_9, %c0_10, %c0_11], %31 {strides = array<i32>} : memref<1x1x128xf32, #tpu.memory_space<vmem>>, vector<1x1x128xf32>,
    return
  }
  func.func @transform_0(%arg0: i32) -> (i32, i32) {
    %c0_i32 = arith.constant 0 : i32
    %c0_i32_0 = arith.constant 0 : i32
    return %arg0, %c0_i32 : i32, i32
  }
  func.func @transform_1(%arg0: i32) -> (i32, i32) {
    %c0_i32 = arith.constant 0 : i32
    %c0_i32_0 = arith.constant 0 : i32
    return %arg0, %c0_i32 : i32, i32
  }
  func.func @transform_2(%arg0: i32) -> (i32, i32, i32) {
    %c0_i32 = arith.constant 0 : i32
    %c0_i32_0 = arith.constant 0 : i32
    %c0_i32_1 = arith.constant 0 : i32
    return %arg0, %c0_i32, %c0_i32_0 : i32, i32, i32
  }
}

</mosaic_0001>

<llo_original>
// kernel: tpu_custom_call.1
$region0: #{tpu_custom_call.1}
  #allocation0 [shape = 'u32[]', space=smem, size = 0x4, offset = 0x4, fixed_abs, tag = 'smem constant byte address 0x4 - core index']
  #allocation1 [shape = 'u32[144,128]{1,0:T(1,128)}', space=vmem, size = 0x12000, scoped, tag = 'internal scratch']
  %s0 = inlined_call_operand.vmem [shape: f32[8,128], index: 0, kind: input, shape index: {}]
  %s1 = inlined_call_operand.vmem [shape: s32[8,1], index: 1, kind: input, shape index: {}]
  %s2 = inlined_call_operand.hbm [shape: f32[1,1,128], index: 2, kind: output, shape index: {}]
  %s3 = sld [smem:[#allocation0]]
  $region18: #{tpu_custom_call.1} parent=0
    _
  %s5 = ssub.s32 1, %s3
  %s6 = scalar_select 0, %s5, %s3
  $region1: #{tpu_custom_call.1} parent=0
    #allocation2 [shape = 'u8[512]{0}', space=vmem, size = 0x400, scoped, tag = 'output window, operand 0, single buffered']
    #allocation3 [shape = 's32[1]{0}', space=sflag, size = 0x4, scoped, tag = 'scoped memory for tpu_custom_call.1']
    %7 = vsyncpa [#allocation3], 0
    // Predicated region
    $region2: #{tpu_custom_call.1} parent=1 // pred_check
      _
    $region3: #{tpu_custom_call.1} parent=1 // pred_check_branch
      %9 = sbr.rel (0) target = $region5
    $region4: #{tpu_custom_call.1} parent=1 // pred_region
      _
    $region5: #{tpu_custom_call.1} parent=1 // pred_fallthru
      _
    // Predicated region
    $region6: #{tpu_custom_call.1} parent=1 // pred_check
      _
    $region7: #{tpu_custom_call.1} parent=1 // pred_check_branch
      %11 = sbr.rel (0) target = $region9
    $region8: #{tpu_custom_call.1} parent=1 // pred_region
      _
    $region9: #{tpu_custom_call.1} parent=1 // pred_fallthru
      _
    %v12 = vld [vmem:[%s0] sm:$0xff]
    %v13 = vld [vmem:[%s1] sm:$0xff]
    %14 = vmax.xlane.f32.xlu0 %v12
    %v15 = vpop.xlane.xlu0 %14
    %v16 = vsub.f32 %v12, %v15
    %v17 = vmul.f32 %v16, 1.442695
    %v18 = vpow.pop %v17
    %19 = vadd.xlane.f32.xlu0 %v18
    %v20 = vpop.xlane.xlu0 %19
    %v21 = vlog2.pop %v20
    %v22 = vmul.f32 %v21, 0.6931472
    %v23 = vadd.f32 %v15, %v22
    %v24 = vlaneseq
    %v25 = vand.u32 %v24, 127
    %26 = vset.pattern.permute.xlu0 0
    %27 = vperm.xlu0 %26, %v13
    %v28 = vpop.permute.xlu0 %27
    %vm29 = vcmp.eq.s32.totalorder %v25, %v28
    %v30 = vsel %vm29, %v12, 0.0
    %31 = vadd.xlane.f32.xlu0 %v30
    %v32 = vpop.xlane.xlu0 %31
    %v33 = vlaneseq
    %v34 = vshrl.u32 %v33, 7
    %s35 = smul.u32 0, 8
    %v36 = vstv %s35
    %v37 = vadd.s32 %v34, %v36
    %vm38 = vcmp.lt.s32.totalorder %v37, 8
    %v39 = vsub.f32 %v23, %v32
    %v40 = vsel %vm38, %v39, 0.0
    %vm41 = vcmask 7168
    %v42 = vsel %vm41, %v40, 0.0
    %43 = vadd.xlane.f32.xlu0 %v42
    %v44 = vpop.xlane.xlu0 %43
    %v45 = vrot.slane %v44, 4
    %v46 = vadd.f32 %v44, %v45
    %v47 = vrot.slane %v46, 2
    %v48 = vadd.f32 %v46, %v47
    %v49 = vrot.slane %v48, 1
    %v50 = vadd.f32 %v48, %v49
    %s51 = vtos %v50
    %v52 = vstv %s51
    %53 = vst [vmem:[#allocation2] sm:$0x1] %v52
    // Predicated region
    $region10: #{tpu_custom_call.1} parent=1 // pred_check
      _
    $region11: #{tpu_custom_call.1} parent=1 // pred_check_branch
      %55 = sbr.rel (0) target = $region13
    $region12: #{tpu_custom_call.1} parent=1 // pred_region
      %s57 = ssub.s32 16, 16
      %58 = vsyncadd [#allocation3], %s57
      %s60 = sshll.u32 [#allocation2], 4
      %s61 = int_to_ptr.vmem [resolvable:$true] %s60
      %63 = dma.vmem_to_hbm [thread:$0]  %s61, 16, %s2, [#allocation3]
    $region13: #{tpu_custom_call.1} parent=1 // pred_fallthru
      _
    // Predicated region
    $region14: #{tpu_custom_call.1} parent=1 // pred_check
      _
    $region15: #{tpu_custom_call.1} parent=1 // pred_check_branch
      %65 = sbr.rel (0) target = $region17
    $region16: #{tpu_custom_call.1} parent=1 // pred_region
      %66 = dma.done [#allocation3], 16
    $region17: #{tpu_custom_call.1} parent=1 // pred_fallthru
      _
    %67 = vsyncpa [#allocation3], 1

</llo_original>
